<compile_context>
chip_gen: v7x
topology: tpu7x:2x2x1
jax: 0.10.0
libtpu: 0.0.40
codegen_flags: <defaults>
</compile_context>

<pallas_src>
import functools

import jax
import jax.numpy as jnp
from jax.experimental import pallas as pl
from jax.experimental.pallas import tpu as pltpu

LANES = 128
SUBLANES = 8
TILE_ROWS = 2048    # (2048,128) f32 block = 1 MiB; 2 inputs x 2 pipeline
                    # buffers = 4 MiB << the explicit 32 MiB VMEM limit below.


def _detect_tensorcores():
    """2 on v7x (two TensorCores per chip), else 1 (v5e/v6e are single-TC;
    v4/v5p megacore splitting of 'parallel' axes is handled by the compiler)."""
    try:
        kind = jax.devices()[0].device_kind.lower()
    except Exception:
        return 1
    return 2 if ("v7" in kind or "7x" in kind) else 1


def _pearson_kernel(x_ref, y_ref, o_ref, sx, sy, sxy, sxx, syy, *,
                    rows_valid, blocks_per_core, need_mask, chunk_rows):
    c = pl.program_id(0)                     # core-slice ("parallel") axis
    i = pl.program_id(1)                     # row-block ("arbitrary") axis
    tile_r = x_ref.shape[0]

    @pl.when(i == 0)
    def _init():
        sx[...] = jnp.zeros_like(sx)
        sy[...] = jnp.zeros_like(sy)
        sxy[...] = jnp.zeros_like(sxy)
        sxx[...] = jnp.zeros_like(sxx)
        syy[...] = jnp.zeros_like(syy)

    def _fold8(a):
        # (chunk_rows,128) -> (8,128); no-op for f32 inputs (chunk_rows == 8).
        if chunk_rows == SUBLANES:
            return a
        return jnp.sum(a.reshape(chunk_rows // SUBLANES, SUBLANES, LANES), axis=0)

    def accum_full():
        # Pure-VPU hot path hidden under the input DMA: products and adds stay
        # in vregs (no (tile_r,128) temporaries written back to VMEM).
        nchunks = tile_r // chunk_rows
        zero = jnp.zeros((chunk_rows, LANES), jnp.float32)

        def body(j, carry):
            asx, asy, asxy, asxx, asyy = carry
            off = pl.multiple_of(j * chunk_rows, chunk_rows)
            xc = x_ref[pl.ds(off, chunk_rows), :].astype(jnp.float32)
            yc = y_ref[pl.ds(off, chunk_rows), :].astype(jnp.float32)
            return (asx + xc, asy + yc, asxy + xc * yc,
                    asxx + xc * xc, asyy + yc * yc)

        asx, asy, asxy, asxx, asyy = jax.lax.fori_loop(
            0, nchunks, body, (zero, zero, zero, zero, zero),
            unroll=max(1, min(8, nchunks)))
        sx[...] += _fold8(asx)
        sy[...] += _fold8(asy)
        sxy[...] += _fold8(asxy)
        sxx[...] += _fold8(asxx)
        syy[...] += _fold8(asyy)

    if not need_mask:
        # Common aligned case: no masking anywhere, no branch.
        accum_full()
    else:
        block_idx = c * blocks_per_core + i
        # Only the partial tail block and the clamped overhang block(s) pay
        # for the row mask; all full blocks take the unmasked hot path.
        is_edge = (block_idx + 1) * tile_r > rows_valid

        pl.when(jnp.logical_not(is_edge))(accum_full)

        @pl.when(is_edge)
        def _accum_edge():
            xv = x_ref[...].astype(jnp.float32)
            yv = y_ref[...].astype(jnp.float32)
            row = (jax.lax.broadcasted_iota(jnp.int32, (tile_r, LANES), 0)
                   + block_idx * tile_r)
            valid = row < rows_valid
            xv = jnp.where(valid, xv, 0.0)   # zero rows past the real data
            yv = jnp.where(valid, yv, 0.0)
            k = tile_r // SUBLANES

            def bsum(v):
                return jnp.sum(v.reshape(k, SUBLANES, LANES), axis=0)

            sx[...] += bsum(xv)
            sy[...] += bsum(yv)
            sxy[...] += bsum(xv * yv)
            sxx[...] += bsum(xv * xv)
            syy[...] += bsum(yv * yv)

    @pl.when(i == pl.num_programs(1) - 1)
    def _finalize():
        o_ref[0] = sx[...]
        o_ref[1] = sy[...]
        o_ref[2] = sxy[...]
        o_ref[3] = sxx[...]
        o_ref[4] = syy[...]


def _pearson_from_sums(s_x, s_y, s_xy, s_xx, s_yy, n):
    # TODO(synk): the single-pass moment formula in f32 can cancel when
    # |mean| >> std or N is huge; shift by a cheap mean estimate / use
    # compensated sums if bit-tight agreement with the two-pass reference
    # is required.
    nf = jnp.float32(n)
    cov = s_xy - s_x * s_y / nf
    vxx = jnp.maximum(s_xx - s_x * s_x / nf, 0.0)   # clamp tiny negative variances
    vyy = jnp.maximum(s_yy - s_y * s_y / nf, 0.0)
    return cov / (jnp.sqrt(vxx) * jnp.sqrt(vyy) + 1e-12)


def pearson_score(y_true, y_pred, *, tile_rows=TILE_ROWS, ncores=None):
    """Pearson correlation of (y_pred, y_true), flattened — PearsonScore.forward."""
    x = jnp.ravel(y_pred)                    # x <- y_pred (matches torch module)
    y = jnp.ravel(y_true)                    # y <- y_true
    n = x.shape[0]

    # Stream f32/bf16 at native width (in-kernel upcast does the rest);
    # normalise anything else to f32 in the wrapper.
    if x.dtype.name not in ("float32", "bfloat16"):
        x = x.astype(jnp.float32)
    if y.dtype.name not in ("float32", "bfloat16"):
        y = y.astype(jnp.float32)

    # Sublane granule: 8 rows for f32, 16 rows if any input is 2-byte (bf16),
    # so every block respects the (8|16,128) tile constraint.
    itemsize = min(x.dtype.itemsize, y.dtype.itemsize)
    sub_g = SUBLANES * (4 // itemsize)
    granule = sub_g * LANES

    # No jnp.pad (it would copy both inputs through HBM): the kernel consumes
    # the aligned prefix; the < granule remainder is reduced in plain JAX.
    n_main = (n // granule) * granule

    if n_main == 0:
        rx = x.astype(jnp.float32)
        ry = y.astype(jnp.float32)
        return _pearson_from_sums(jnp.sum(rx), jnp.sum(ry), jnp.sum(rx * ry),
                                  jnp.sum(rx * rx), jnp.sum(ry * ry), n)

    rows = n_main // LANES
    xm = x[:n_main].reshape(rows, LANES)
    ym = y[:n_main].reshape(rows, LANES)

    tile_r = min(int(tile_rows), rows)
    tile_r = max(sub_g, (tile_r // sub_g) * sub_g)   # multiple of the granule
    nblocks = pl.cdiv(rows, tile_r)

    if ncores is None:
        ncores = _detect_tensorcores()
    ncores = max(1, min(int(ncores), nblocks))
    bpc = pl.cdiv(nblocks, ncores)           # row-blocks per core slice
    need_mask = (rows % tile_r != 0) or (nblocks % ncores != 0)

    def in_map(c, i):
        # Clamp so a core's overhang block maps to a valid block (its rows are
        # masked to zero in-kernel) rather than an out-of-bounds DMA.
        return (jnp.minimum(c * bpc + i, nblocks - 1), 0)

    kernel = functools.partial(
        _pearson_kernel, rows_valid=rows, blocks_per_core=bpc,
        need_mask=need_mask, chunk_rows=sub_g)
    # TODO(synk): if input sizes vary at runtime, pass `rows` via scalar
    # prefetch (num_scalar_prefetch=1) to avoid one recompile per shape.
    # TODO(synk): on v7x, verify in xprof that the leading "parallel" axis is
    # actually sharded across both TensorCores; if not, switch that axis to
    # pltpu.CORE_PARALLEL (keeping the row-block axis "arbitrary").

    partials = pl.pallas_call(
        kernel,
        out_shape=jax.ShapeDtypeStruct((ncores * 5, SUBLANES, LANES), jnp.float32),
        grid_spec=pltpu.PrefetchScalarGridSpec(
            num_scalar_prefetch=0,
            grid=(ncores, bpc),
            in_specs=[
                pl.BlockSpec((tile_r, LANES), in_map),
                pl.BlockSpec((tile_r, LANES), in_map),
            ],
            out_specs=pl.BlockSpec((5, SUBLANES, LANES), lambda c, i: (c, 0, 0)),
            scratch_shapes=[pltpu.VMEM((SUBLANES, LANES), jnp.float32)] * 5,
        ),
        compiler_params=pltpu.CompilerParams(
            dimension_semantics=("parallel" if ncores > 1 else "arbitrary",
                                 "arbitrary"),
            vmem_limit_bytes=32 * 1024 * 1024,
        ),
    )(xm, ym)

    # Final cross-lane reduction, remainder fold-in and Pearson formula: free in XLA.
    s = partials.reshape(ncores, 5, SUBLANES * LANES).sum(axis=(0, 2))
    s_x, s_y, s_xy, s_xx, s_yy = s[0], s[1], s[2], s[3], s[4]

    if n_main != n:
        rx = x[n_main:].astype(jnp.float32)
        ry = y[n_main:].astype(jnp.float32)
        s_x = s_x + jnp.sum(rx)
        s_y = s_y + jnp.sum(ry)
        s_xy = s_xy + jnp.sum(rx * ry)
        s_xx = s_xx + jnp.sum(rx * rx)
        s_yy = s_yy + jnp.sum(ry * ry)

    return _pearson_from_sums(s_x, s_y, s_xy, s_xx, s_yy, n)


if __name__ == "__main__":
    key = jax.random.PRNGKey(0)
    k1, k2, k3, k4 = jax.random.split(key, 4)

    def ref_pearson(yt, yp):
        xf = jnp.ravel(yp).astype(jnp.float32)
        yf = jnp.ravel(yt).astype(jnp.float32)
        vx = xf - jnp.mean(xf)
        vy = yf - jnp.mean(yf)
        return jnp.sum(vx * vy) / (
            jnp.sqrt(jnp.sum(vx ** 2)) * jnp.sqrt(jnp.sum(vy ** 2)) + 1e-12)

    # Example NCHW-shaped inputs (batch=2, channels=4, spatial=16x16).
    y_true = jax.random.normal(k1, (2, 4, 16, 16), dtype=jnp.float32)
    y_pred = 0.7 * y_true + 0.3 * jax.random.normal(k2, (2, 4, 16, 16),
                                                    dtype=jnp.float32)
    corr = jax.block_until_ready(pearson_score(y_true, y_pred))
    ref = ref_pearson(y_true, y_pred)
    assert abs(float(corr) - float(ref)) < 1e-4, (float(corr), float(ref))

    # Exercise the masked tail-block path (rows not a multiple of tile_r) and
    # the plain-JAX remainder path (n not a multiple of the granule).
    a = jax.random.normal(k3, (3301,), dtype=jnp.float32)
    b = 0.5 * a + 0.5 * jax.random.normal(k4, (3301,), dtype=jnp.float32)
    corr2 = jax.block_until_ready(pearson_score(a, b, tile_rows=16))
    ref2 = ref_pearson(a, b)
    assert abs(float(corr2) - float(ref2)) < 1e-4, (float(corr2), float(ref2))

    # Exercise native bf16 streaming (inputs stay bf16 in HBM; upcast in-kernel).
    at = a[:2148].astype(jnp.bfloat16)
    bt = b[:2148].astype(jnp.bfloat16)
    corr3 = jax.block_until_ready(pearson_score(at, bt))
    ref3 = ref_pearson(at, bt)
    assert abs(float(corr3) - float(ref3)) < 1e-3, (float(corr3), float(ref3))

    print("KERNEL_OK")
</pallas_src>

<mosaic_0001>
module attributes {stable_mosaic.version = 11 : i64} {
  func.func @_pearson_kernel(%arg0: i32, %arg1: i32, %arg2: memref<16x128xf32, #tpu.memory_space<vmem>>, %arg3: memref<16x128xf32, #tpu.memory_space<vmem>>, %arg4: memref<5x8x128xf32, #tpu.memory_space<vmem>>, %arg5: memref<8x128xf32, #tpu.memory_space<vmem>>, %arg6: memref<8x128xf32, #tpu.memory_space<vmem>>, %arg7: memref<8x128xf32, #tpu.memory_space<vmem>>, %arg8: memref<8x128xf32, #tpu.memory_space<vmem>>, %arg9: memref<8x128xf32, #tpu.memory_space<vmem>>) attributes {dimension_semantics = [#tpu.dimension_semantics<arbitrary>, #tpu.dimension_semantics<arbitrary>], iteration_bounds = array<i64: 1, 1>, scalar_prefetch = 0 : i64, scratch_operands = 5 : i64, tpu.core_type = #tpu.core_type<tc>, window_params = [{transform_indices = @transform_0, window_bounds = array<i64: 16, 128>}, {transform_indices = @transform_1, window_bounds = array<i64: 16, 128>}, {transform_indices = @transform_2, window_bounds = array<i64: 5, 8, 128>}]} {
    %c0_i32 = arith.constant 0 : i32
    %0 = arith.cmpi eq, %arg1, %c0_i32 : i32
    %1 = arith.extui %0 : i1 to i32
    %c0_i32_0 = arith.constant 0 : i32
    %2 = arith.cmpi ne, %1, %c0_i32_0 : i32
    scf.if %2 {
      %cst_28 = arith.constant 0.000000e+00 : f32
      %50 = vector.broadcast %cst_28 : f32 to vector<8x128xf32>
      %c0_29 = arith.constant 0 : index
      %c0_30 = arith.constant 0 : index
      %51 = vector.load %arg5[%c0_29, %c0_30] : memref<8x128xf32, #tpu.memory_space<vmem>>, vector<8x128xf32>
      tpu.vector_store %arg5[%c0_29, %c0_30], %50 {strides = array<i32>} : memref<8x128xf32, #tpu.memory_space<vmem>>, vector<8x128xf32>,
      %cst_31 = arith.constant 0.000000e+00 : f32
      %52 = vector.broadcast %cst_31 : f32 to vector<8x128xf32>
      %c0_32 = arith.constant 0 : index
      %c0_33 = arith.constant 0 : index
      %53 = vector.load %arg6[%c0_32, %c0_33] : memref<8x128xf32, #tpu.memory_space<vmem>>, vector<8x128xf32>
      tpu.vector_store %arg6[%c0_32, %c0_33], %52 {strides = array<i32>} : memref<8x128xf32, #tpu.memory_space<vmem>>, vector<8x128xf32>,
      %cst_34 = arith.constant 0.000000e+00 : f32
      %54 = vector.broadcast %cst_34 : f32 to vector<8x128xf32>
      %c0_35 = arith.constant 0 : index
      %c0_36 = arith.constant 0 : index
      %55 = vector.load %arg7[%c0_35, %c0_36] : memref<8x128xf32, #tpu.memory_space<vmem>>, vector<8x128xf32>
      tpu.vector_store %arg7[%c0_35, %c0_36], %54 {strides = array<i32>} : memref<8x128xf32, #tpu.memory_space<vmem>>, vector<8x128xf32>,
      %cst_37 = arith.constant 0.000000e+00 : f32
      %56 = vector.broadcast %cst_37 : f32 to vector<8x128xf32>
      %c0_38 = arith.constant 0 : index
      %c0_39 = arith.constant 0 : index
      %57 = vector.load %arg8[%c0_38, %c0_39] : memref<8x128xf32, #tpu.memory_space<vmem>>, vector<8x128xf32>
      tpu.vector_store %arg8[%c0_38, %c0_39], %56 {strides = array<i32>} : memref<8x128xf32, #tpu.memory_space<vmem>>, vector<8x128xf32>,
      %cst_40 = arith.constant 0.000000e+00 : f32
      %58 = vector.broadcast %cst_40 : f32 to vector<8x128xf32>
      %c0_41 = arith.constant 0 : index
      %c0_42 = arith.constant 0 : index
      %59 = vector.load %arg9[%c0_41, %c0_42] : memref<8x128xf32, #tpu.memory_space<vmem>>, vector<8x128xf32>
      tpu.vector_store %arg9[%c0_41, %c0_42], %58 {strides = array<i32>} : memref<8x128xf32, #tpu.memory_space<vmem>>, vector<8x128xf32>,
    } else {
    }
    %cst = arith.constant 0.000000e+00 : f32
    %3 = vector.broadcast %cst : f32 to vector<8x128xf32>
    %c0_i32_1 = arith.constant 0 : i32
    %c8_i32 = arith.constant 8 : i32
    %4 = arith.muli %c0_i32_1, %c8_i32 : i32
    %5 = tpu.assume_multiple %4, 8 : i32
    %6 = arith.index_cast %5 : i32 to index
    %c0 = arith.constant 0 : index
    %7 = vector.load %arg2[%6, %c0] : memref<16x128xf32, #tpu.memory_space<vmem>>, vector<8x128xf32>
    %8 = arith.index_cast %5 : i32 to index
    %c0_2 = arith.constant 0 : index
    %9 = vector.load %arg3[%8, %c0_2] : memref<16x128xf32, #tpu.memory_space<vmem>>, vector<8x128xf32>
    %10 = arith.addf %3, %7 : vector<8x128xf32>
    %11 = arith.addf %3, %9 : vector<8x128xf32>
    %12 = arith.mulf %7, %9 : vector<8x128xf32>
    %13 = arith.addf %3, %12 : vector<8x128xf32>
    %14 = arith.mulf %7, %7 : vector<8x128xf32>
    %15 = arith.addf %3, %14 : vector<8x128xf32>
    %16 = arith.mulf %9, %9 : vector<8x128xf32>
    %17 = arith.addf %3, %16 : vector<8x128xf32>
    %c1_i32 = arith.constant 1 : i32
    %c8_i32_3 = arith.constant 8 : i32
    %18 = arith.muli %c1_i32, %c8_i32_3 : i32
    %19 = tpu.assume_multiple %18, 8 : i32
    %20 = arith.index_cast %19 : i32 to index
    %c0_4 = arith.constant 0 : index
    %21 = vector.load %arg2[%20, %c0_4] : memref<16x128xf32, #tpu.memory_space<vmem>>, vector<8x128xf32>
    %22 = arith.index_cast %19 : i32 to index
    %c0_5 = arith.constant 0 : index
    %23 = vector.load %arg3[%22, %c0_5] : memref<16x128xf32, #tpu.memory_space<vmem>>, vector<8x128xf32>
    %24 = arith.addf %10, %21 : vector<8x128xf32>
    %25 = arith.addf %11, %23 : vector<8x128xf32>
    %26 = arith.mulf %21, %23 : vector<8x128xf32>
    %27 = arith.addf %13, %26 : vector<8x128xf32>
    %28 = arith.mulf %21, %21 : vector<8x128xf32>
    %29 = arith.addf %15, %28 : vector<8x128xf32>
    %30 = arith.mulf %23, %23 : vector<8x128xf32>
    %31 = arith.addf %17, %30 : vector<8x128xf32>
    %c2_i32 = arith.constant 2 : i32
    %c0_6 = arith.constant 0 : index
    %c0_7 = arith.constant 0 : index
    %32 = vector.load %arg5[%c0_6, %c0_7] : memref<8x128xf32, #tpu.memory_space<vmem>>, vector<8x128xf32>
    %33 = arith.addf %32, %24 : vector<8x128xf32>
    %c0_8 = arith.constant 0 : index
    %c0_9 = arith.constant 0 : index
    %34 = vector.load %arg5[%c0_8, %c0_9] : memref<8x128xf32, #tpu.memory_space<vmem>>, vector<8x128xf32>
    tpu.vector_store %arg5[%c0_8, %c0_9], %33 {strides = array<i32>} : memref<8x128xf32, #tpu.memory_space<vmem>>, vector<8x128xf32>,
    %c0_10 = arith.constant 0 : index
    %c0_11 = arith.constant 0 : index
    %35 = vector.load %arg6[%c0_10, %c0_11] : memref<8x128xf32, #tpu.memory_space<vmem>>, vector<8x128xf32>
    %36 = arith.addf %35, %25 : vector<8x128xf32>
    %c0_12 = arith.constant 0 : index
    %c0_13 = arith.constant 0 : index
    %37 = vector.load %arg6[%c0_12, %c0_13] : memref<8x128xf32, #tpu.memory_space<vmem>>, vector<8x128xf32>
    tpu.vector_store %arg6[%c0_12, %c0_13], %36 {strides = array<i32>} : memref<8x128xf32, #tpu.memory_space<vmem>>, vector<8x128xf32>,
    %c0_14 = arith.constant 0 : index
    %c0_15 = arith.constant 0 : index
    %38 = vector.load %arg7[%c0_14, %c0_15] : memref<8x128xf32, #tpu.memory_space<vmem>>, vector<8x128xf32>
    %39 = arith.addf %38, %27 : vector<8x128xf32>
    %c0_16 = arith.constant 0 : index
    %c0_17 = arith.constant 0 : index
    %40 = vector.load %arg7[%c0_16, %c0_17] : memref<8x128xf32, #tpu.memory_space<vmem>>, vector<8x128xf32>
    tpu.vector_store %arg7[%c0_16, %c0_17], %39 {strides = array<i32>} : memref<8x128xf32, #tpu.memory_space<vmem>>, vector<8x128xf32>,
    %c0_18 = arith.constant 0 : index
    %c0_19 = arith.constant 0 : index
    %41 = vector.load %arg8[%c0_18, %c0_19] : memref<8x128xf32, #tpu.memory_space<vmem>>, vector<8x128xf32>
    %42 = arith.addf %41, %29 : vector<8x128xf32>
    %c0_20 = arith.constant 0 : index
    %c0_21 = arith.constant 0 : index
    %43 = vector.load %arg8[%c0_20, %c0_21] : memref<8x128xf32, #tpu.memory_space<vmem>>, vector<8x128xf32>
    tpu.vector_store %arg8[%c0_20, %c0_21], %42 {strides = array<i32>} : memref<8x128xf32, #tpu.memory_space<vmem>>, vector<8x128xf32>,
    %c0_22 = arith.constant 0 : index
    %c0_23 = arith.constant 0 : index
    %44 = vector.load %arg9[%c0_22, %c0_23] : memref<8x128xf32, #tpu.memory_space<vmem>>, vector<8x128xf32>
    %45 = arith.addf %44, %31 : vector<8x128xf32>
    %c0_24 = arith.constant 0 : index
    %c0_25 = arith.constant 0 : index
    %46 = vector.load %arg9[%c0_24, %c0_25] : memref<8x128xf32, #tpu.memory_space<vmem>>, vector<8x128xf32>
    tpu.vector_store %arg9[%c0_24, %c0_25], %45 {strides = array<i32>} : memref<8x128xf32, #tpu.memory_space<vmem>>, vector<8x128xf32>,
    %c0_i32_26 = arith.constant 0 : i32
    %47 = arith.cmpi eq, %arg1, %c0_i32_26 : i32
    %48 = arith.extui %47 : i1 to i32
    %c0_i32_27 = arith.constant 0 : i32
    %49 = arith.cmpi ne, %48, %c0_i32_27 : i32
    scf.if %49 {
      %c0_28 = arith.constant 0 : index
      %c0_29 = arith.constant 0 : index
      %50 = vector.load %arg5[%c0_28, %c0_29] : memref<8x128xf32, #tpu.memory_space<vmem>>, vector<8x128xf32>
      %c0_30 = arith.constant 0 : index
      %c0_31 = arith.constant 0 : index
      %c0_32 = arith.constant 0 : index
      %51 = vector.load %arg4[%c0_30, %c0_31, %c0_32] : memref<5x8x128xf32, #tpu.memory_space<vmem>>, vector<1x8x128xf32>
      %52 = vector.shape_cast %51 : vector<1x8x128xf32> to vector<8x128xf32>
      %53 = vector.shape_cast %50 : vector<8x128xf32> to vector<1x8x128xf32>
      tpu.vector_store %arg4[%c0_30, %c0_31, %c0_32], %53 {strides = array<i32>} : memref<5x8x128xf32, #tpu.memory_space<vmem>>, vector<1x8x128xf32>,
      %c0_33 = arith.constant 0 : index
      %c0_34 = arith.constant 0 : index
      %54 = vector.load %arg6[%c0_33, %c0_34] : memref<8x128xf32, #tpu.memory_space<vmem>>, vector<8x128xf32>
      %c1 = arith.constant 1 : index
      %c0_35 = arith.constant 0 : index
      %c0_36 = arith.constant 0 : index
      %55 = vector.load %arg4[%c1, %c0_35, %c0_36] : memref<5x8x128xf32, #tpu.memory_space<vmem>>, vector<1x8x128xf32>
      %56 = vector.shape_cast %55 : vector<1x8x128xf32> to vector<8x128xf32>
      %57 = vector.shape_cast %54 : vector<8x128xf32> to vector<1x8x128xf32>
      tpu.vector_store %arg4[%c1, %c0_35, %c0_36], %57 {strides = array<i32>} : memref<5x8x128xf32, #tpu.memory_space<vmem>>, vector<1x8x128xf32>,
      %c0_37 = arith.constant 0 : index
      %c0_38 = arith.constant 0 : index
      %58 = vector.load %arg7[%c0_37, %c0_38] : memref<8x128xf32, #tpu.memory_space<vmem>>, vector<8x128xf32>
      %c2 = arith.constant 2 : index
      %c0_39 = arith.constant 0 : index
      %c0_40 = arith.constant 0 : index
      %59 = vector.load %arg4[%c2, %c0_39, %c0_40] : memref<5x8x128xf32, #tpu.memory_space<vmem>>, vector<1x8x128xf32>
      %60 = vector.shape_cast %59 : vector<1x8x128xf32> to vector<8x128xf32>
      %61 = vector.shape_cast %58 : vector<8x128xf32> to vector<1x8x128xf32>
      tpu.vector_store %arg4[%c2, %c0_39, %c0_40], %61 {strides = array<i32>} : memref<5x8x128xf32, #tpu.memory_space<vmem>>, vector<1x8x128xf32>,
      %c0_41 = arith.constant 0 : index
      %c0_42 = arith.constant 0 : index
      %62 = vector.load %arg8[%c0_41, %c0_42] : memref<8x128xf32, #tpu.memory_space<vmem>>, vector<8x128xf32>
      %c3 = arith.constant 3 : index
      %c0_43 = arith.constant 0 : index
      %c0_44 = arith.constant 0 : index
      %63 = vector.load %arg4[%c3, %c0_43, %c0_44] : memref<5x8x128xf32, #tpu.memory_space<vmem>>, vector<1x8x128xf32>
      %64 = vector.shape_cast %63 : vector<1x8x128xf32> to vector<8x128xf32>
      %65 = vector.shape_cast %62 : vector<8x128xf32> to vector<1x8x128xf32>
      tpu.vector_store %arg4[%c3, %c0_43, %c0_44], %65 {strides = array<i32>} : memref<5x8x128xf32, #tpu.memory_space<vmem>>, vector<1x8x128xf32>,
      %c0_45 = arith.constant 0 : index
      %c0_46 = arith.constant 0 : index
      %66 = vector.load %arg9[%c0_45, %c0_46] : memref<8x128xf32, #tpu.memory_space<vmem>>, vector<8x128xf32>
      %c4 = arith.constant 4 : index
      %c0_47 = arith.constant 0 : index
      %c0_48 = arith.constant 0 : index
      %67 = vector.load %arg4[%c4, %c0_47, %c0_48] : memref<5x8x128xf32, #tpu.memory_space<vmem>>, vector<1x8x128xf32>
      %68 = vector.shape_cast %67 : vector<1x8x128xf32> to vector<8x128xf32>
      %69 = vector.shape_cast %66 : vector<8x128xf32> to vector<1x8x128xf32>
      tpu.vector_store %arg4[%c4, %c0_47, %c0_48], %69 {strides = array<i32>} : memref<5x8x128xf32, #tpu.memory_space<vmem>>, vector<1x8x128xf32>,
    } else {
    }
    return
  }
  func.func @transform_0(%arg0: i32, %arg1: i32) -> (i32, i32) {
    %c1_i32 = arith.constant 1 : i32
    %0 = arith.muli %arg0, %c1_i32 : i32
    %1 = arith.addi %0, %arg1 : i32
    %c0_i32 = arith.constant 0 : i32
    %2 = arith.minsi %1, %c0_i32 : i32
    %c0_i32_0 = arith.constant 0 : i32
    %c0_i32_1 = arith.constant 0 : i32
    return %2, %c0_i32_0 : i32, i32
  }
  func.func @transform_1(%arg0: i32, %arg1: i32) -> (i32, i32) {
    %c1_i32 = arith.constant 1 : i32
    %0 = arith.muli %arg0, %c1_i32 : i32
    %1 = arith.addi %0, %arg1 : i32
    %c0_i32 = arith.constant 0 : i32
    %2 = arith.minsi %1, %c0_i32 : i32
    %c0_i32_0 = arith.constant 0 : i32
    %c0_i32_1 = arith.constant 0 : i32
    return %2, %c0_i32_0 : i32, i32
  }
  func.func @transform_2(%arg0: i32, %arg1: i32) -> (i32, i32, i32) {
    %c0_i32 = arith.constant 0 : i32
    %c0_i32_0 = arith.constant 0 : i32
    %c0_i32_1 = arith.constant 0 : i32
    return %arg0, %c0_i32, %c0_i32_0 : i32, i32, i32
  }
}

</mosaic_0001>

<llo_original>
// kernel: tpu_custom_call.1
$region0: #{tpu_custom_call.1}
  #allocation0 [shape = 'u32[]', space=smem, size = 0x4, offset = 0x4, fixed_abs, tag = 'smem constant byte address 0x4 - core index']
  #allocation1 [shape = 'u32[144,128]{1,0:T(1,128)}', space=vmem, size = 0x12000, scoped, tag = 'internal scratch']
  #allocation2 [shape = 'f32[8,128]{1,0:T(8,128)}', space=vmem, size = 0x1000, scoped, tag = 'scratch operand']
  #allocation3 [shape = 'f32[8,128]{1,0:T(8,128)}', space=vmem, size = 0x1000, scoped, tag = 'scratch operand']
  #allocation4 [shape = 'f32[8,128]{1,0:T(8,128)}', space=vmem, size = 0x1000, scoped, tag = 'scratch operand']
  #allocation5 [shape = 'f32[8,128]{1,0:T(8,128)}', space=vmem, size = 0x1000, scoped, tag = 'scratch operand']
  #allocation6 [shape = 'f32[8,128]{1,0:T(8,128)}', space=vmem, size = 0x1000, scoped, tag = 'scratch operand']
  %s0 = inlined_call_operand.hbm [shape: f32[16,128], index: 0, kind: input, shape index: {}]
  %s1 = inlined_call_operand.hbm [shape: f32[16,128], index: 1, kind: input, shape index: {}]
  %s2 = inlined_call_operand.hbm [shape: f32[5,8,128], index: 2, kind: output, shape index: {}]
  %s3 = sld [smem:[#allocation0]]
  $region34: #{tpu_custom_call.1} parent=0
    _
  %s5 = ssub.s32 1, %s3
  %s6 = scalar_select 0, %s5, %s3
  $region1: #{tpu_custom_call.1} parent=0
    #allocation7 [shape = 'u8[8192]{0}', space=vmem, size = 0x2000, scoped, tag = 'input window, operand 0, single buffered']
    #allocation8 [shape = 's32[1]{0}', space=sflag, size = 0x4, scoped, tag = 'scoped memory for tpu_custom_call.1']
    #allocation9 [shape = 's32[1]{0}', space=sflag, size = 0x4, scoped, tag = 'scoped memory for tpu_custom_call.1']
    #allocation10 [shape = 'u8[8192]{0}', space=vmem, size = 0x2000, scoped, tag = 'input window, operand 1, single buffered']
    #allocation11 [shape = 's32[1]{0}', space=sflag, size = 0x4, scoped, tag = 'scoped memory for tpu_custom_call.1']
    #allocation12 [shape = 'u8[20480]{0}', space=vmem, size = 0x5000, scoped, tag = 'output window, operand 0, single buffered']
    %7 = vsyncpa [#allocation8], 0
    %8 = vsyncpa [#allocation11], 0
    %9 = vsyncpa [#allocation9], 0
    // Predicated region
    $region2: #{tpu_custom_call.1} parent=1 // pred_check
      _
    $region3: #{tpu_custom_call.1} parent=1 // pred_check_branch
      %11 = sbr.rel (0) target = $region5
    $region4: #{tpu_custom_call.1} parent=1 // pred_region
      %s12 = sadd.s32 0, 0
      %p13 = scmp.lt.s32.totalorder %s12, 0
      %s14 = scalar_select %p13, %s12, 0
      %s15 = smul.u32 2, %s14
      %s17 = ssub.s32 256, 256
      %18 = vsyncadd [#allocation8], %s17
      %s19 = smul.addr %s15, 128
      %s20 = scalar_lea.hbm %s0, %s19
      %s21 = sshll.u32 [#allocation7], 4
      %s22 = int_to_ptr.vmem [resolvable:$true] %s21
      %27 = dma.hbm_to_vmem [thread:$0]  %s20, 256, %s22, [#allocation8], 128, 128, 8
    $region5: #{tpu_custom_call.1} parent=1 // pred_fallthru
      _
    // Predicated region
    $region6: #{tpu_custom_call.1} parent=1 // pred_check
      _
    $region7: #{tpu_custom_call.1} parent=1 // pred_check_branch
      %29 = sbr.rel (0) target = $region9
    $region8: #{tpu_custom_call.1} parent=1 // pred_region
      %s30 = sadd.s32 0, 0
      %p31 = scmp.lt.s32.totalorder %s30, 0
      %s32 = scalar_select %p31, %s30, 0
      %s33 = smul.u32 2, %s32
      %s35 = ssub.s32 256, 256
      %36 = vsyncadd [#allocation11], %s35
      %s37 = smul.addr %s33, 128
      %s38 = scalar_lea.hbm %s1, %s37
      %s39 = sshll.u32 [#allocation10], 4
      %s40 = int_to_ptr.vmem [resolvable:$true] %s39
      %45 = dma.hbm_to_vmem [thread:$0]  %s38, 256, %s40, [#allocation11], 128, 128, 8
    $region9: #{tpu_custom_call.1} parent=1 // pred_fallthru
      _
    // Predicated region
    $region10: #{tpu_custom_call.1} parent=1 // pred_check
      _
    $region11: #{tpu_custom_call.1} parent=1 // pred_check_branch
      %47 = sbr.rel (0) target = $region13
    $region12: #{tpu_custom_call.1} parent=1 // pred_region
      %48 = dma.done [#allocation8], 256
    $region13: #{tpu_custom_call.1} parent=1 // pred_fallthru
      _
    // Predicated region
    $region14: #{tpu_custom_call.1} parent=1 // pred_check
      _
    $region15: #{tpu_custom_call.1} parent=1 // pred_check_branch
      %50 = sbr.rel (0) target = $region17
    $region16: #{tpu_custom_call.1} parent=1 // pred_region
      %51 = dma.done [#allocation11], 256
    $region17: #{tpu_custom_call.1} parent=1 // pred_fallthru
      _
    %s52 = sadd.s32 0, 0
    %p53 = scmp.lt.s32.totalorder %s52, 0
    %s54 = scalar_select %p53, %s52, 0
    %s55 = smul.u32 2, %s54
    %s56 = sadd.s32 0, 0
    %p57 = scmp.lt.s32.totalorder %s56, 0
    %s58 = scalar_select %p57, %s56, 0
    %s59 = smul.u32 2, %s58
    %p60 = scmp.eq.s32.totalorder 0, 0
    // Predicated region
    $region18: #{tpu_custom_call.1} parent=1 // pred_check
      %p61 = pneg %p60
    $region19: #{tpu_custom_call.1} parent=1 // pred_check_branch
      %63 = sbr.rel (%p61) target = $region21
    $region20: #{tpu_custom_call.1} parent=1 // pred_region
      %64 = vst [vmem:[#allocation2] sm:$0xff] 0.0
      %65 = vst [vmem:[#allocation3] sm:$0xff] 0.0
      %66 = vst [vmem:[#allocation4] sm:$0xff] 0.0
      %67 = vst [vmem:[#allocation5] sm:$0xff] 0.0
      %68 = vst [vmem:[#allocation6] sm:$0xff] 0.0
    $region21: #{tpu_custom_call.1} parent=1 // pred_fallthru
      _
    %v69 = vld [vmem:[#allocation7] sm:$0xff]
    %v70 = vld [vmem:[#allocation10] sm:$0xff]
    %v71 = vadd.f32 %v69, 0.0
    %v72 = vadd.f32 %v70, 0.0
    %v73 = vmul.f32 %v69, %v70
    %v74 = vadd.f32 %v73, 0.0
    %v75 = vmul.f32 %v69, %v69
    %v76 = vadd.f32 %v75, 0.0
    %v77 = vmul.f32 %v70, %v70
    %v78 = vadd.f32 %v77, 0.0
    %s79 = scalar_lea.vmem [#allocation7], 8
    %v80 = vld [vmem:[%s79] sm:$0xff]
    %s81 = scalar_lea.vmem [#allocation10], 8
    %v82 = vld [vmem:[%s81] sm:$0xff]
    %v83 = vadd.f32 %v71, %v80
    %v84 = vadd.f32 %v72, %v82
    %v85 = vmul.f32 %v80, %v82
    %v86 = vadd.f32 %v74, %v85
    %v87 = vmul.f32 %v80, %v80
    %v88 = vadd.f32 %v76, %v87
    %v89 = vmul.f32 %v82, %v82
    %v90 = vadd.f32 %v78, %v89
    %v91 = vld [vmem:[#allocation2] sm:$0xff]
    %v92 = vadd.f32 %v91, %v83
    %93 = vst [vmem:[#allocation2] sm:$0xff] %v92
    %v94 = vld [vmem:[#allocation3] sm:$0xff]
    %v95 = vadd.f32 %v94, %v84
    %96 = vst [vmem:[#allocation3] sm:$0xff] %v95
    %v97 = vld [vmem:[#allocation4] sm:$0xff]
    %v98 = vadd.f32 %v97, %v86
    %99 = vst [vmem:[#allocation4] sm:$0xff] %v98
    %v100 = vld [vmem:[#allocation5] sm:$0xff]
    %v101 = vadd.f32 %v100, %v88
    %102 = vst [vmem:[#allocation5] sm:$0xff] %v101
    %v103 = vld [vmem:[#allocation6] sm:$0xff]
    %v104 = vadd.f32 %v103, %v90
    %105 = vst [vmem:[#allocation6] sm:$0xff] %v104
    // Predicated region
    $region22: #{tpu_custom_call.1} parent=1 // pred_check
      %p106 = pneg %p60
    $region23: #{tpu_custom_call.1} parent=1 // pred_check_branch
      %108 = sbr.rel (%p106) target = $region25
    $region24: #{tpu_custom_call.1} parent=1 // pred_region
      %v109 = vld [vmem:[#allocation2] sm:$0xff]
      %110 = vst [vmem:[#allocation12] sm:$0xff] %v109
      %v111 = vld [vmem:[#allocation3] sm:$0xff]
      %s112 = scalar_lea.vmem [#allocation12], 8
      %113 = vst [vmem:[%s112] sm:$0xff] %v111
      %v114 = vld [vmem:[#allocation4] sm:$0xff]
      %s115 = scalar_lea.vmem [#allocation12], 16
      %116 = vst [vmem:[%s115] sm:$0xff] %v114
      %v117 = vld [vmem:[#allocation5] sm:$0xff]
      %s118 = scalar_lea.vmem [#allocation12], 24
      %119 = vst [vmem:[%s118] sm:$0xff] %v117
      %v120 = vld [vmem:[#allocation6] sm:$0xff]
      %s121 = scalar_lea.vmem [#allocation12], 32
      %122 = vst [vmem:[%s121] sm:$0xff] %v120
    $region25: #{tpu_custom_call.1} parent=1 // pred_fallthru
      _
    // Predicated region
    $region26: #{tpu_custom_call.1} parent=1 // pred_check
      _
    $region27: #{tpu_custom_call.1} parent=1 // pred_check_branch
      %124 = sbr.rel (0) target = $region29
    $region28: #{tpu_custom_call.1} parent=1 // pred_region
      %s126 = ssub.s32 640, 640
      %127 = vsyncadd [#allocation9], %s126
      %s128 = sshll.u32 [#allocation12], 4
      %s129 = int_to_ptr.vmem [resolvable:$true] %s128
      %134 = dma.vmem_to_hbm [thread:$0]  %s129, 640, %s2, [#allocation9], 128, 128, 8
    $region29: #{tpu_custom_call.1} parent=1 // pred_fallthru
      _
    // Predicated region
    $region30: #{tpu_custom_call.1} parent=1 // pred_check
      _
    $region31: #{tpu_custom_call.1} parent=1 // pred_check_branch
      %136 = sbr.rel (0) target = $region33
    $region32: #{tpu_custom_call.1} parent=1 // pred_region
      %137 = dma.done [#allocation9], 640
    $region33: #{tpu_custom_call.1} parent=1 // pred_fallthru
      _
    %138 = vsyncpa [#allocation8], 1
    %139 = vsyncpa [#allocation11], 1
    %140 = vsyncpa [#allocation9], 1

</llo_original>
